<compile_context>
chip_gen: v7x
topology: tpu7x:2x2x1
jax: 0.10.0
libtpu: 0.0.40
codegen_flags: <defaults>
</compile_context>

<pallas_src>
import functools
import math

import jax
import jax.numpy as jnp
from jax.experimental import pallas as pl
from jax.experimental.pallas import tpu as pltpu

LANE = 128
SUBLANE = 8
MAX_BATCH_TILE = 2048


def _round_up(n: int, m: int) -> int:
    return ((n + m - 1) // m) * m


def _cdiv(a: int, b: int) -> int:
    return -(-a // b)


def _choose_batch_tile(batch: int):
    """Balanced batch tiling: every tile <= MAX_BATCH_TILE, >=2 (even) tiles for big batches."""
    n_tiles = _cdiv(batch, MAX_BATCH_TILE)
    if batch >= 256:                  # enough work per tile to be worth splitting
        n_tiles = max(n_tiles, 2)     # >=2 tiles so "parallel" spans both v7x TensorCores
    if n_tiles > 1 and n_tiles % 2:
        n_tiles += 1                  # even tile count -> balanced split across 2 TCs
    tb = _round_up(_cdiv(batch, n_tiles), SUBLANE)
    b_pad = _round_up(batch, tb)
    return tb, b_pad


def _make_mlp_kernel(num_layers: int, latent_dim: int, use_tanh: bool):
    """Kernel closure for a fixed (static) number of layers / latent width."""
    act = jnp.tanh if use_tanh else (lambda v: jnp.maximum(v, 0.0))

    def kernel(x_ref, w_ref, b_ref, out_ref, xpad_ref):
        # x_ref:    (TB, latent_dim)  streamed, unpadded activations
        # w_ref:    (L, P, P)         zero-padded weights, VMEM-resident (P = 128)
        # b_ref:    (L, 1, P)         zero-padded biases, VMEM-resident
        # out_ref:  (TB, P)           lane-dense padded output (unmasked vst)
        # xpad_ref: (TB, P) scratch   lane-padded first activation
        #
        # Zero lane-padding is exact for this MLP: relu(0)=tanh(0)=0 and zero
        # weight rows/cols contribute nothing.
        xpad_ref[...] = jnp.zeros_like(xpad_ref)
        xpad_ref[:, :latent_dim] = x_ref[...].astype(jnp.float32)
        h = xpad_ref[...]
        for layer in range(num_layers):               # static unroll; L is tiny
            lhs = h if w_ref.dtype == jnp.float32 else h.astype(w_ref.dtype)
            h = jnp.dot(lhs, w_ref[layer], preferred_element_type=jnp.float32)
            h = h + b_ref[layer].astype(jnp.float32)
            if layer < num_layers - 1:
                h = act(h)
        out_ref[...] = h.astype(out_ref.dtype)

    return kernel


def init_latent_ode_params(key, latent_dim=4, nhidden=20, num_layers=2):
    """PyTorch-nn.Linear-style init (uniform +-1/sqrt(fan_in)); W stored (in, out)."""
    num_middle = max(num_layers - 2, 0)
    keys = jax.random.split(key, 2 * (num_middle + 2))

    def linear(kw, kb, fan_in, fan_out):
        bound = 1.0 / math.sqrt(fan_in)
        w = jax.random.uniform(kw, (fan_in, fan_out), jnp.float32, -bound, bound)
        b = jax.random.uniform(kb, (1, fan_out), jnp.float32, -bound, bound)
        return w, b

    params = {
        "fc1": linear(keys[0], keys[1], latent_dim, nhidden),
        "middle": [
            linear(keys[2 + 2 * i], keys[3 + 2 * i], nhidden, nhidden)
            for i in range(num_middle)
        ],
        "fc_final": linear(keys[-2], keys[-1], nhidden, latent_dim),
    }
    return params


def pack_latent_ode_params(params, param_dtype=jnp.float32):
    """Pack every layer into one (L, 128, 128) weight slab + one (L, 1, 128) bias slab.

    Call ONCE per parameter set (hoisted out of the per-evaluation path) and reuse
    the returned slabs across the ODE solver's many f(t, x) evaluations.
    param_dtype=jnp.bfloat16 halves parameter DMA (mainly useful on v5e);
    accumulation inside the kernel stays float32.
    """
    layers = [params["fc1"]] + list(params["middle"]) + [params["fc_final"]]
    pad = _round_up(max(max(w.shape) for w, _ in layers), LANE)   # 128 for defaults
    ws, bs = [], []
    for w, b in layers:
        fi, fo = w.shape
        wp = jnp.zeros((pad, pad), param_dtype).at[:fi, :fo].set(w.astype(param_dtype))
        bp = jnp.zeros((1, pad), param_dtype).at[:, :fo].set(
            b.reshape(1, -1).astype(param_dtype))
        ws.append(wp)
        bs.append(bp)
    return jnp.stack(ws, axis=0), jnp.stack(bs, axis=0)


@functools.partial(jax.jit, static_argnames=("use_tanh",))
def latent_ode_func(t, x, w_packed, b_packed, use_tanh=False):
    """Forward pass of LatentODEfunc. `t` is unused (kept for API fidelity).

    w_packed / b_packed come from pack_latent_ode_params (packed once, reused).
    """
    del t
    num_layers, pad, _ = w_packed.shape
    batch, latent_dim = x.shape

    tb, b_pad = _choose_batch_tile(batch)
    grid = (b_pad // tb,)

    x_in = x if b_pad == batch else jnp.pad(x, ((0, b_pad - batch), (0, 0)))

    kernel = _make_mlp_kernel(num_layers, latent_dim, use_tanh)

    # Advisory cost hint: count what is actually DMA'd / computed (padded shapes).
    a_item = jnp.dtype(x.dtype).itemsize
    p_item = jnp.dtype(w_packed.dtype).itemsize
    flops = 2 * b_pad * num_layers * pad * pad
    transcendentals = b_pad * pad * (num_layers - 1) if use_tanh else 0
    bytes_accessed = (
        w_packed.size * p_item + b_packed.size * p_item
        + b_pad * latent_dim * a_item        # streamed (unpadded) input
        + b_pad * pad * a_item               # lane-dense padded output
    )

    out = pl.pallas_call(
        kernel,
        out_shape=jax.ShapeDtypeStruct((b_pad, pad), x.dtype),
        grid_spec=pltpu.PrefetchScalarGridSpec(
            num_scalar_prefetch=0,
            grid=grid,
            in_specs=[
                # Activations stream over the batch grid; last block dim equals the
                # full array dim, so no lane padding is materialized in HBM.
                pl.BlockSpec((tb, latent_dim), lambda i: (i, 0)),
                # Parameters: constant block index -> fetched once, VMEM-resident;
                # single pipeline buffer (no dead second buffer).
                pl.BlockSpec((num_layers, pad, pad), lambda i: (0, 0, 0),
                             pipeline_mode=pl.Buffered(1)),
                pl.BlockSpec((num_layers, 1, pad), lambda i: (0, 0, 0),
                             pipeline_mode=pl.Buffered(1)),
            ],
            out_specs=pl.BlockSpec((tb, pad), lambda i: (i, 0)),
            scratch_shapes=[pltpu.VMEM((tb, pad), jnp.float32)],
        ),
        compiler_params=pltpu.CompilerParams(
            dimension_semantics=("parallel",),
        ),
        cost_estimate=pl.CostEstimate(
            flops=flops,
            transcendentals=transcendentals,
            bytes_accessed=bytes_accessed,
        ),
    )(x_in, w_packed, b_packed)

    return out[:batch, :latent_dim]


def latent_ode_func_ref(t, x, params, use_tanh=False):
    """Pure-JAX reference matching the PyTorch forward."""
    del t
    act = jnp.tanh if use_tanh else (lambda v: jnp.maximum(v, 0.0))
    w1, b1 = params["fc1"]
    h = act(x @ w1 + b1)
    for w, b in params["middle"]:
        h = act(h @ w + b)
    wf, bf = params["fc_final"]
    return h @ wf + bf


if __name__ == "__main__":
    key = jax.random.PRNGKey(0)
    kx, kp1, kp2 = jax.random.split(key, 3)

    batch, latent_dim, nhidden = 8, 4, 20
    x = jax.random.normal(kx, (batch, latent_dim), jnp.float32)
    t = jnp.zeros((), jnp.float32)  # unused by the forward, as in the PyTorch module

    ok = True

    # Default config: num_layers=2 (no middle layers), ReLU activation.
    params2 = init_latent_ode_params(kp1, latent_dim, nhidden, num_layers=2)
    w2, b2 = pack_latent_ode_params(params2)            # packed ONCE, reused per eval
    out2 = jax.block_until_ready(latent_ode_func(t, x, w2, b2, use_tanh=False))
    ref2 = latent_ode_func_ref(t, x, params2, use_tanh=False)
    ok &= bool(jnp.allclose(out2, ref2, atol=1e-5, rtol=1e-5))

    # Deeper config: num_layers=4 (two middle layers), tanh activation.
    params4 = init_latent_ode_params(kp2, latent_dim, nhidden, num_layers=4)
    w4, b4 = pack_latent_ode_params(params4)
    out4 = jax.block_until_ready(latent_ode_func(t, x, w4, b4, use_tanh=True))
    ref4 = latent_ode_func_ref(t, x, params4, use_tanh=True)
    ok &= bool(jnp.allclose(out4, ref4, atol=1e-5, rtol=1e-5))

    # Larger, ragged batch exercising the multi-tile (>= 2 tiles) grid path.
    xb = jax.random.normal(kx, (300, latent_dim), jnp.float32)
    outb = jax.block_until_ready(latent_ode_func(t, xb, w4, b4, use_tanh=True))
    refb = latent_ode_func_ref(t, xb, params4, use_tanh=True)
    ok &= bool(jnp.allclose(outb, refb, atol=1e-5, rtol=1e-5))

    # bf16-packed parameters (halves parameter DMA, mainly for v5e); f32 accumulation.
    w4h, b4h = pack_latent_ode_params(params4, param_dtype=jnp.bfloat16)
    outh = jax.block_until_ready(latent_ode_func(t, x, w4h, b4h, use_tanh=True))
    ok &= bool(jnp.allclose(outh, ref4, atol=5e-2, rtol=5e-2))

    assert out2.shape == (batch, latent_dim) and out4.shape == (batch, latent_dim)
    assert outb.shape == (300, latent_dim)
    print("KERNEL_OK" if ok else "KERNEL_MISMATCH")
</pallas_src>

<mosaic_0001>
module attributes {stable_mosaic.version = 11 : i64} {
  func.func @kernel(%arg0: i32, %arg1: memref<8x4xf32, #tpu.memory_space<vmem>>, %arg2: memref<2x128x128xf32, #tpu.memory_space<vmem>>, %arg3: memref<2x1x128xf32, #tpu.memory_space<vmem>>, %arg4: memref<8x128xf32, #tpu.memory_space<vmem>>, %arg5: memref<8x128xf32, #tpu.memory_space<vmem>>) attributes {dimension_semantics = [#tpu.dimension_semantics<parallel>], iteration_bounds = array<i64: 1>, scalar_prefetch = 0 : i64, scratch_operands = 1 : i64, tpu.core_type = #tpu.core_type<tc>, window_params = [{transform_indices = @transform_0, window_bounds = array<i64: 8, 4>}, {pipeline_mode = #tpu.pipeline_mode<synchronous>, transform_indices = @transform_1, window_bounds = array<i64: 2, 128, 128>}, {pipeline_mode = #tpu.pipeline_mode<synchronous>, transform_indices = @transform_2, window_bounds = array<i64: 2, 1, 128>}, {transform_indices = @transform_3, window_bounds = array<i64: 8, 128>}]} {
    %cst = arith.constant 0.000000e+00 : f32
    %0 = vector.broadcast %cst : f32 to vector<8x128xf32>
    %c0 = arith.constant 0 : index
    %c0_0 = arith.constant 0 : index
    %1 = vector.load %arg5[%c0, %c0_0] : memref<8x128xf32, #tpu.memory_space<vmem>>, vector<8x128xf32>
    tpu.vector_store %arg5[%c0, %c0_0], %0 {strides = array<i32>} : memref<8x128xf32, #tpu.memory_space<vmem>>, vector<8x128xf32>,
    %c0_1 = arith.constant 0 : index
    %c0_2 = arith.constant 0 : index
    %2 = vector.load %arg1[%c0_1, %c0_2] : memref<8x4xf32, #tpu.memory_space<vmem>>, vector<8x4xf32>
    %c0_3 = arith.constant 0 : index
    %c0_4 = arith.constant 0 : index
    %3 = vector.load %arg5[%c0_3, %c0_4] : memref<8x128xf32, #tpu.memory_space<vmem>>, vector<8x4xf32>
    tpu.vector_store %arg5[%c0_3, %c0_4], %2 {strides = array<i32>} : memref<8x128xf32, #tpu.memory_space<vmem>>, vector<8x4xf32>,
    %c0_5 = arith.constant 0 : index
    %c0_6 = arith.constant 0 : index
    %4 = vector.load %arg5[%c0_5, %c0_6] : memref<8x128xf32, #tpu.memory_space<vmem>>, vector<8x128xf32>
    %c0_7 = arith.constant 0 : index
    %c0_8 = arith.constant 0 : index
    %c0_9 = arith.constant 0 : index
    %5 = vector.load %arg2[%c0_7, %c0_8, %c0_9] : memref<2x128x128xf32, #tpu.memory_space<vmem>>, vector<1x128x128xf32>
    %6 = vector.shape_cast %5 : vector<1x128x128xf32> to vector<128x128xf32>
    %cst_10 = arith.constant dense<0.000000e+00> : vector<8x128xf32>
    %7 = tpu.matmul %4, %6, %cst_10 {dimension_numbers = #tpu.dot_dimension_numbers<[1], [0], [0], [1], [0, 0, 1, 1], [], []>} : vector<8x128xf32>, vector<128x128xf32>, vector<8x128xf32> -> vector<8x128xf32>
    %c0_11 = arith.constant 0 : index
    %c0_12 = arith.constant 0 : index
    %c0_13 = arith.constant 0 : index
    %8 = vector.load %arg3[%c0_11, %c0_12, %c0_13] : memref<2x1x128xf32, #tpu.memory_space<vmem>>, vector<1x1x128xf32>
    %9 = vector.shape_cast %8 : vector<1x1x128xf32> to vector<1x128xf32>
    %10 = vector.broadcast %9 : vector<1x128xf32> to vector<8x128xf32>
    %11 = arith.addf %7, %10 : vector<8x128xf32>
    %cst_14 = arith.constant 0.000000e+00 : f32
    %12 = vector.broadcast %cst_14 : f32 to vector<8x128xf32>
    %13 = arith.maximumf %11, %12 : vector<8x128xf32>
    %c1 = arith.constant 1 : index
    %c0_15 = arith.constant 0 : index
    %c0_16 = arith.constant 0 : index
    %14 = vector.load %arg2[%c1, %c0_15, %c0_16] : memref<2x128x128xf32, #tpu.memory_space<vmem>>, vector<1x128x128xf32>
    %15 = vector.shape_cast %14 : vector<1x128x128xf32> to vector<128x128xf32>
    %cst_17 = arith.constant dense<0.000000e+00> : vector<8x128xf32>
    %16 = tpu.matmul %13, %15, %cst_17 {dimension_numbers = #tpu.dot_dimension_numbers<[1], [0], [0], [1], [0, 0, 1, 1], [], []>} : vector<8x128xf32>, vector<128x128xf32>, vector<8x128xf32> -> vector<8x128xf32>
    %c1_18 = arith.constant 1 : index
    %c0_19 = arith.constant 0 : index
    %c0_20 = arith.constant 0 : index
    %17 = vector.load %arg3[%c1_18, %c0_19, %c0_20] : memref<2x1x128xf32, #tpu.memory_space<vmem>>, vector<1x1x128xf32>
    %18 = vector.shape_cast %17 : vector<1x1x128xf32> to vector<1x128xf32>
    %19 = vector.broadcast %18 : vector<1x128xf32> to vector<8x128xf32>
    %20 = arith.addf %16, %19 : vector<8x128xf32>
    %c0_21 = arith.constant 0 : index
    %c0_22 = arith.constant 0 : index
    %21 = vector.load %arg4[%c0_21, %c0_22] : memref<8x128xf32, #tpu.memory_space<vmem>>, vector<8x128xf32>
    tpu.vector_store %arg4[%c0_21, %c0_22], %20 {strides = array<i32>} : memref<8x128xf32, #tpu.memory_space<vmem>>, vector<8x128xf32>,
    return
  }
  func.func @transform_0(%arg0: i32) -> (i32, i32) {
    %c0_i32 = arith.constant 0 : i32
    %c0_i32_0 = arith.constant 0 : i32
    return %arg0, %c0_i32 : i32, i32
  }
  func.func @transform_1(%arg0: i32) -> (i32, i32, i32) {
    %c0_i32 = arith.constant 0 : i32
    %c0_i32_0 = arith.constant 0 : i32
    %c0_i32_1 = arith.constant 0 : i32
    %c0_i32_2 = arith.constant 0 : i32
    return %c0_i32, %c0_i32_0, %c0_i32_1 : i32, i32, i32
  }
  func.func @transform_2(%arg0: i32) -> (i32, i32, i32) {
    %c0_i32 = arith.constant 0 : i32
    %c0_i32_0 = arith.constant 0 : i32
    %c0_i32_1 = arith.constant 0 : i32
    %c0_i32_2 = arith.constant 0 : i32
    return %c0_i32, %c0_i32_0, %c0_i32_1 : i32, i32, i32
  }
  func.func @transform_3(%arg0: i32) -> (i32, i32) {
    %c0_i32 = arith.constant 0 : i32
    %c0_i32_0 = arith.constant 0 : i32
    return %arg0, %c0_i32 : i32, i32
  }
}

</mosaic_0001>

<llo_original>
// kernel: latent_ode_func.1
$region0: #{latent_ode_func.1}
  #allocation0 [shape = 'u32[]', space=smem, size = 0x4, offset = 0x4, fixed_abs, tag = 'smem constant byte address 0x4 - core index']
  #allocation1 [shape = 'u32[144,128]{1,0:T(1,128)}', space=vmem, size = 0x12000, scoped, tag = 'internal scratch']
  #allocation2 [shape = 'f32[8,128]{1,0:T(8,128)}', space=vmem, size = 0x1000, scoped, tag = 'scratch operand']
  %s0 = inlined_call_operand.vmem [shape: f32[8,4], index: 0, kind: input, shape index: {}]
  %s1 = inlined_call_operand.hbm [shape: f32[2,128,128], index: 1, kind: input, shape index: {}]
  %s2 = inlined_call_operand.vmem [shape: f32[2,1,128], index: 2, kind: input, shape index: {}]
  %s3 = inlined_call_operand.vmem [shape: f32[8,128], index: 3, kind: output, shape index: {}]
  %s4 = sld [smem:[#allocation0]]
  $region26: #{latent_ode_func.1} parent=0
    _
  %s6 = ssub.s32 1, %s4
  %s7 = scalar_select 0, %s6, %s4
  $region1: #{latent_ode_func.1} parent=0
    #allocation3 [shape = 'u8[131072]{0}', space=vmem, size = 0x20000, scoped, tag = 'input window, operand 1, single buffered']
    #allocation4 [shape = 's32[1]{0}', space=sflag, size = 0x4, scoped, tag = 'scoped memory for latent_ode_func.1']
    %8 = vsyncpa [#allocation4], 0
    // Predicated region
    $region2: #{latent_ode_func.1} parent=1 // pred_check
      _
    $region3: #{latent_ode_func.1} parent=1 // pred_check_branch
      %10 = sbr.rel (0) target = $region5
    $region4: #{latent_ode_func.1} parent=1 // pred_region
      _
    $region5: #{latent_ode_func.1} parent=1 // pred_fallthru
      _
    // Predicated region
    $region6: #{latent_ode_func.1} parent=1 // pred_check
      _
    $region7: #{latent_ode_func.1} parent=1 // pred_check_branch
      %12 = sbr.rel (0) target = $region9
    $region8: #{latent_ode_func.1} parent=1 // pred_region
      %s14 = ssub.s32 4096, 4096
      %15 = vsyncadd [#allocation4], %s14
      %s16 = sshll.u32 [#allocation3], 4
      %s17 = int_to_ptr.vmem [resolvable:$true] %s16
      %22 = dma.hbm_to_vmem [thread:$0]  %s1, 4096, %s17, [#allocation4], 128, 128, 8
    $region9: #{latent_ode_func.1} parent=1 // pred_fallthru
      _
    // Predicated region
    $region10: #{latent_ode_func.1} parent=1 // pred_check
      _
    $region11: #{latent_ode_func.1} parent=1 // pred_check_branch
      %24 = sbr.rel (0) target = $region13
    $region12: #{latent_ode_func.1} parent=1 // pred_region
      _
    $region13: #{latent_ode_func.1} parent=1 // pred_fallthru
      _
    // Predicated region
    $region14: #{latent_ode_func.1} parent=1 // pred_check
      _
    $region15: #{latent_ode_func.1} parent=1 // pred_check_branch
      %26 = sbr.rel (0) target = $region17
    $region16: #{latent_ode_func.1} parent=1 // pred_region
      %27 = dma.done [#allocation4], 4096
    $region17: #{latent_ode_func.1} parent=1 // pred_fallthru
      _
    %28 = vst [vmem:[#allocation2] sm:$0xff] 0.0
    %v29 = vld [vmem:[%s0] sm:$0xff]
    %vm30 = vcmask 31744
    %31 = vst.msk [vmem:[#allocation2] sm:$0xff] %vm30, %v29
    %v32 = vld [vmem:[#allocation2] sm:$0xff]
    %v33 = vld [vmem:[#allocation3] sm:$0xff]
    %v34 = vld [vmem:[#allocation3 + $0x8] sm:$0xff]
    %v35 = vld [vmem:[#allocation3 + $0x10] sm:$0xff]
    %v36 = vld [vmem:[#allocation3 + $0x18] sm:$0xff]
    %v37 = vld [vmem:[#allocation3 + $0x20] sm:$0xff]
    %v38 = vld [vmem:[#allocation3 + $0x28] sm:$0xff]
    %v39 = vld [vmem:[#allocation3 + $0x30] sm:$0xff]
    %v40 = vld [vmem:[#allocation3 + $0x38] sm:$0xff]
    %v41 = vld [vmem:[#allocation3 + $0x40] sm:$0xff]
    %v42 = vld [vmem:[#allocation3 + $0x48] sm:$0xff]
    %v43 = vld [vmem:[#allocation3 + $0x50] sm:$0xff]
    %v44 = vld [vmem:[#allocation3 + $0x58] sm:$0xff]
    %v45 = vld [vmem:[#allocation3 + $0x60] sm:$0xff]
    %v46 = vld [vmem:[#allocation3 + $0x68] sm:$0xff]
    %v47 = vld [vmem:[#allocation3 + $0x70] sm:$0xff]
    %v48 = vld [vmem:[#allocation3 + $0x78] sm:$0xff]
    %v49 = vld [vmem:[%s2] sm:$0x1]
    %v51 = vlaneseq
    %v52 = vshrl.u32 %v51, 7
    %v53 = vsub.s32 0, %v52
    %v54 = vrot.slane %v49, %v53
    %56 = vmatprep.subr.mxu0 0.0
    %57 = vmatpush1.msra.mxu0 %v33
    %58 = vmatprep.subr.mxu0 0.0
    %59 = vmatpush1.msra.mxu0 %v34
    %60 = vmatprep.subr.mxu0 0.0
    %61 = vmatpush1.msra.mxu0 %v35
    %62 = vmatprep.subr.mxu0 0.0
    %63 = vmatpush1.msra.mxu0 %v36
    %64 = vmatprep.subr.mxu0 0.0
    %65 = vmatpush1.msra.mxu0 %v37
    %66 = vmatprep.subr.mxu0 0.0
    %67 = vmatpush1.msra.mxu0 %v38
    %68 = vmatprep.subr.mxu0 0.0
    %69 = vmatpush1.msra.mxu0 %v39
    %70 = vmatprep.subr.mxu0 0.0
    %71 = vmatpush1.msra.mxu0 %v40
    %72 = vmatprep.subr.mxu0 0.0
    %73 = vmatpush1.msra.mxu0 %v41
    %74 = vmatprep.subr.mxu0 0.0
    %75 = vmatpush1.msra.mxu0 %v42
    %76 = vmatprep.subr.mxu0 0.0
    %77 = vmatpush1.msra.mxu0 %v43
    %78 = vmatprep.subr.mxu0 0.0
    %79 = vmatpush1.msra.mxu0 %v44
    %80 = vmatprep.subr.mxu0 0.0
    %81 = vmatpush1.msra.mxu0 %v45
    %82 = vmatprep.subr.mxu0 0.0
    %83 = vmatpush1.msra.mxu0 %v46
    %84 = vmatprep.subr.mxu0 0.0
    %85 = vmatpush1.msra.mxu0 %v47
    %86 = vmatprep.subr.mxu0 0.0
    %87 = vmatpush1.msra.mxu0 %v48
    %88 = vmatprep.subr.mxu0 0.0
    %89 = vmatpush1.msra.mxu0 0.0
    %90 = vmatprep.subr.mxu0 0.0
    %91 = vmatpush1.msra.mxu0 0.0
    %92 = vmatprep.subr.mxu0 0.0
    %93 = vmatpush1.msra.mxu0 0.0
    %94 = vmatprep.subr.mxu0 0.0
    %95 = vmatpush1.msra.mxu0 0.0
    %96 = vmatprep.subr.mxu0 0.0
    %97 = vmatpush1.msra.mxu0 0.0
    %98 = vmatprep.subr.mxu0 0.0
    %99 = vmatpush1.msra.mxu0 0.0
    %100 = vmatprep.subr.mxu0 0.0
    %101 = vmatpush1.msra.mxu0 0.0
    %102 = vmatprep.subr.mxu0 0.0
    %103 = vmatpush1.msra.mxu0 0.0
    %104 = vmatprep.subr.mxu0 0.0
    %105 = vmatpush1.msra.mxu0 0.0
    %106 = vmatprep.subr.mxu0 0.0
    %107 = vmatpush1.msra.mxu0 0.0
    %108 = vmatprep.subr.mxu0 0.0
    %109 = vmatpush1.msra.mxu0 0.0
    %110 = vmatprep.subr.mxu0 0.0
    %111 = vmatpush1.msra.mxu0 0.0
    %112 = vmatprep.subr.mxu0 0.0
    %113 = vmatpush1.msra.mxu0 0.0
    %114 = vmatprep.subr.mxu0 0.0
    %115 = vmatpush1.msra.mxu0 0.0
    %116 = vmatprep.subr.mxu0 0.0
    %117 = vmatpush1.msra.mxu0 0.0
    %118 = vmatprep.subr.mxu0 0.0
    %119 = vmatpush1.msra.mxu0 0.0
    %120 = vmatprep.mubr.f32.mxu0 0.0
    %121 = vmatmul.mubr.f32.gmra.mrb[0].mxu0 %v32
    %v122 = vpop.f32.mrb[0].mxu0
    %v123 = vadd.f32 %v54, %v122
    %v124 = vpop.f32.mrb[0].mxu0
    %125 = vdwg.mxu0
    %v126 = vmax.f32 %v123, 0.0
    %s127 = scalar_lea.vmem [#allocation3], 128
    %v128 = vld [vmem:[%s127] sm:$0xff]
    %v129 = vld [vmem:[%s127 + $0x8] sm:$0xff]
    %v130 = vld [vmem:[%s127 + $0x10] sm:$0xff]
    %v131 = vld [vmem:[%s127 + $0x18] sm:$0xff]
    %v132 = vld [vmem:[%s127 + $0x20] sm:$0xff]
    %v133 = vld [vmem:[%s127 + $0x28] sm:$0xff]
    %v134 = vld [vmem:[%s127 + $0x30] sm:$0xff]
    %v135 = vld [vmem:[%s127 + $0x38] sm:$0xff]
    %v136 = vld [vmem:[%s127 + $0x40] sm:$0xff]
    %v137 = vld [vmem:[%s127 + $0x48] sm:$0xff]
    %v138 = vld [vmem:[%s127 + $0x50] sm:$0xff]
    %v139 = vld [vmem:[%s127 + $0x58] sm:$0xff]
    %v140 = vld [vmem:[%s127 + $0x60] sm:$0xff]
    %v141 = vld [vmem:[%s127 + $0x68] sm:$0xff]
    %v142 = vld [vmem:[%s127 + $0x70] sm:$0xff]
    %v143 = vld [vmem:[%s127 + $0x78] sm:$0xff]
    %s144 = scalar_lea.vmem %s2, 1
    %v145 = vld [vmem:[%s144] sm:$0x1]
    %v147 = vlaneseq
    %v148 = vshrl.u32 %v147, 7
    %v149 = vsub.s32 0, %v148
    %v150 = vrot.slane %v145, %v149
    %152 = vmatprep.subr.mxu0 0.0
    %153 = vmatpush1.msra.mxu0 %v128
    %154 = vmatprep.subr.mxu0 0.0
    %155 = vmatpush1.msra.mxu0 %v129
    %156 = vmatprep.subr.mxu0 0.0
    %157 = vmatpush1.msra.mxu0 %v130
    %158 = vmatprep.subr.mxu0 0.0
    %159 = vmatpush1.msra.mxu0 %v131
    %160 = vmatprep.subr.mxu0 0.0
    %161 = vmatpush1.msra.mxu0 %v132
    %162 = vmatprep.subr.mxu0 0.0
    %163 = vmatpush1.msra.mxu0 %v133
    %164 = vmatprep.subr.mxu0 0.0
    %165 = vmatpush1.msra.mxu0 %v134
    %166 = vmatprep.subr.mxu0 0.0
    %167 = vmatpush1.msra.mxu0 %v135
    %168 = vmatprep.subr.mxu0 0.0
    %169 = vmatpush1.msra.mxu0 %v136
    %170 = vmatprep.subr.mxu0 0.0
    %171 = vmatpush1.msra.mxu0 %v137
    %172 = vmatprep.subr.mxu0 0.0
    %173 = vmatpush1.msra.mxu0 %v138
    %174 = vmatprep.subr.mxu0 0.0
    %175 = vmatpush1.msra.mxu0 %v139
    %176 = vmatprep.subr.mxu0 0.0
    %177 = vmatpush1.msra.mxu0 %v140
    %178 = vmatprep.subr.mxu0 0.0
    %179 = vmatpush1.msra.mxu0 %v141
    %180 = vmatprep.subr.mxu0 0.0
    %181 = vmatpush1.msra.mxu0 %v142
    %182 = vmatprep.subr.mxu0 0.0
    %183 = vmatpush1.msra.mxu0 %v143
    %184 = vmatprep.subr.mxu0 0.0
    %185 = vmatpush1.msra.mxu0 0.0
    %186 = vmatprep.subr.mxu0 0.0
    %187 = vmatpush1.msra.mxu0 0.0
    %188 = vmatprep.subr.mxu0 0.0
    %189 = vmatpush1.msra.mxu0 0.0
    %190 = vmatprep.subr.mxu0 0.0
    %191 = vmatpush1.msra.mxu0 0.0
    %192 = vmatprep.subr.mxu0 0.0
    %193 = vmatpush1.msra.mxu0 0.0
    %194 = vmatprep.subr.mxu0 0.0
    %195 = vmatpush1.msra.mxu0 0.0
    %196 = vmatprep.subr.mxu0 0.0
    %197 = vmatpush1.msra.mxu0 0.0
    %198 = vmatprep.subr.mxu0 0.0
    %199 = vmatpush1.msra.mxu0 0.0
    %200 = vmatprep.subr.mxu0 0.0
    %201 = vmatpush1.msra.mxu0 0.0
    %202 = vmatprep.subr.mxu0 0.0
    %203 = vmatpush1.msra.mxu0 0.0
    %204 = vmatprep.subr.mxu0 0.0
    %205 = vmatpush1.msra.mxu0 0.0
    %206 = vmatprep.subr.mxu0 0.0
    %207 = vmatpush1.msra.mxu0 0.0
    %208 = vmatprep.subr.mxu0 0.0
    %209 = vmatpush1.msra.mxu0 0.0
    %210 = vmatprep.subr.mxu0 0.0
    %211 = vmatpush1.msra.mxu0 0.0
    %212 = vmatprep.subr.mxu0 0.0
    %213 = vmatpush1.msra.mxu0 0.0
    %214 = vmatprep.subr.mxu0 0.0
    %215 = vmatpush1.msra.mxu0 0.0
    %216 = vmatprep.mubr.f32.mxu0 0.0
    %217 = vmatmul.mubr.f32.gmra.mrb[0].mxu0 %v126
    %v218 = vpop.f32.mrb[0].mxu0
    %v219 = vadd.f32 %v150, %v218
    %v220 = vpop.f32.mrb[0].mxu0
    %221 = vdwg.mxu0
    %222 = vst [vmem:[%s3] sm:$0xff] %v219
    // Predicated region
    $region18: #{latent_ode_func.1} parent=1 // pred_check
      _
    $region19: #{latent_ode_func.1} parent=1 // pred_check_branch
      %224 = sbr.rel (0) target = $region21
    $region20: #{latent_ode_func.1} parent=1 // pred_region
      _
    $region21: #{latent_ode_func.1} parent=1 // pred_fallthru
      _
    // Predicated region
    $region22: #{latent_ode_func.1} parent=1 // pred_check
      _
    $region23: #{latent_ode_func.1} parent=1 // pred_check_branch
      %226 = sbr.rel (0) target = $region25
    $region24: #{latent_ode_func.1} parent=1 // pred_region
      _
    $region25: #{latent_ode_func.1} parent=1 // pred_fallthru
      _
    %227 = vsyncpa [#allocation4], 1

</llo_original>
